<compile_context>
chip_gen: v5e
topology: v5e:2x2
jax: 0.10.0
libtpu: 0.0.40
codegen_flags: <defaults>
</compile_context>

<pallas_src>
import functools
import math

import jax
import jax.numpy as jnp
from jax.experimental import pallas as pl
from jax.experimental.pallas import tpu as pltpu

LN_EPS = 1e-5  # PyTorch nn.LayerNorm default


def _round_up(x, m):
    return (x + m - 1) // m * m


def _build_param_slab(mats):
    """Pack parameter matrices into ONE lane-padded f32 slab.

    Every sub-block starts on an 8-aligned row (sublane tile) and at lane 0, so
    the static ref slices taken inside the kernel never cross a (8, 128) tile
    boundary.  Returns (slab, row_offsets).
    """
    lanes = _round_up(max(m.shape[1] for m in mats), 128)
    blocks, offs, r = [], [], 0
    for m in mats:
        offs.append(r)
        pr = _round_up(m.shape[0], 8)
        blocks.append(
            jnp.pad(m.astype(jnp.float32),
                    ((0, pr - m.shape[0]), (0, lanes - m.shape[1]))))
        r += pr
    return jnp.concatenate(blocks, axis=0), tuple(offs)


def ddpg_critic_kernel(obs_ref, act_ref, par_ref, q_ref, *,
                       offs, n_obs, n_act, obs_neurons, n_h1, n_rew, matmul_dtype):
    o_wobs, o_pobs, o_w1o, o_w1a, o_p1, o_wq, o_bq = offs
    cast = jnp.dtype(matmul_dtype) != jnp.dtype(jnp.float32)

    def mm(a, w):
        # bf16 (or other) feed with f32 MXU accumulation; f32 path emits no casts.
        if cast:
            a = a.astype(matmul_dtype)
            w = w.astype(matmul_dtype)
        return jnp.dot(a, w, preferred_element_type=jnp.float32)

    def row(off, r, width):
        # (1, width) param row, loaded once and broadcast once against the
        # (block_b, width) activation (single use, not in a loop).
        return par_ref[off + r:off + r + 1, :width]

    def ln_relu(h, p_off, width):
        # LayerNorm statistics / ReLU always in f32 (biased variance, like torch).
        mu = jnp.mean(h, axis=-1, keepdims=True)
        var = jnp.mean((h - mu) ** 2, axis=-1, keepdims=True)
        h = (h - mu) * jax.lax.rsqrt(var + LN_EPS)
        return jnp.maximum(h * row(p_off, 1, width) + row(p_off, 2, width), 0.0)

    obs = obs_ref[...]
    act = act_ref[...]

    # obs_layer: Linear -> LayerNorm -> ReLU
    h = mm(obs, par_ref[o_wobs:o_wobs + n_obs, :obs_neurons]) + row(o_pobs, 0, obs_neurons)
    h = ln_relu(h, o_pobs, obs_neurons)

    # StandardLayer on concat([h, act]) -- concat fused away:
    #   x @ W1 == h @ W1[:obs_neurons] + act @ W1[obs_neurons:]
    x1 = (mm(h, par_ref[o_w1o:o_w1o + obs_neurons, :n_h1])
          + mm(act, par_ref[o_w1a:o_w1a + n_act, :n_h1])
          + row(o_p1, 0, n_h1))
    h1 = ln_relu(x1, o_p1, n_h1)

    # final Linear head -> Q  (n_rew=1: narrow masked store, negligible at this size)
    q_ref[...] = mm(h1, par_ref[o_wq:o_wq + n_h1, :n_rew]) + row(o_bq, 0, n_rew)


def ddpg_critic_forward(obs, action, params, *, block_b=None,
                        matmul_dtype=jnp.float32):
    """Runs DDPGCriticNet.forward(obs, action) as one Pallas kernel."""
    B, n_obs = obs.shape
    n_act = action.shape[1]
    slab = params["slab"]
    offs = params["offsets"]
    obs_neurons = params["obs_neurons"]
    n_h1 = params["n_h1"]
    n_rew = params["n_rewards"]

    if block_b is None:
        # Largest batch block that divides B.  Resident footprint per step is
        # slab + 2 block-deep activations (tens of KiB here) -- well under the
        # scoped VMEM limit even on v7x (64 MiB physical / 32 MiB scoped).
        block_b = B
        for cand in (512, 256, 128, 64, 32, 16, 8):
            if B % cand == 0:
                block_b = cand
                break
    assert B % block_b == 0, "batch must be divisible by block_b"
    assert block_b == B or block_b % 8 == 0, "block_b must be a multiple of 8"

    kernel = functools.partial(
        ddpg_critic_kernel, offs=offs, n_obs=n_obs, n_act=n_act,
        obs_neurons=obs_neurons, n_h1=n_h1, n_rew=n_rew,
        matmul_dtype=matmul_dtype)

    flops = 2 * B * (n_obs * obs_neurons + (obs_neurons + n_act) * n_h1 + n_h1 * n_rew)
    bytes_accessed = 4 * (obs.size + action.size + slab.size + B * n_rew)
    cost = pl.CostEstimate(flops=int(flops), transcendentals=2 * B,
                           bytes_accessed=int(bytes_accessed))

    return pl.pallas_call(
        kernel,
        out_shape=jax.ShapeDtypeStruct((B, n_rew), jnp.float32),
        grid_spec=pltpu.PrefetchScalarGridSpec(
            num_scalar_prefetch=0,
            grid=(B // block_b,),
            in_specs=[
                pl.BlockSpec((block_b, n_obs), lambda i: (i, 0)),
                pl.BlockSpec((block_b, n_act), lambda i: (i, 0)),
                # one packed weight slab; constant index_map -> stays resident in VMEM
                pl.BlockSpec(slab.shape, lambda i: (0, 0)),
            ],
            out_specs=pl.BlockSpec((block_b, n_rew), lambda i: (i, 0)),
        ),
        # Independent batch blocks: on v7x the parallel axis lets Mosaic shard
        # grid steps across both TensorCores; harmless on v5e/v6e (single TC).
        compiler_params=pltpu.CompilerParams(dimension_semantics=("parallel",)),
        cost_estimate=cost,
    )(obs, action, slab)


def init_params(key, n_obs, n_act, obs_neurons, fc_dims, n_rewards):
    """Synthetic init mirroring the PyTorch module's parameter shapes/init."""
    assert len(fc_dims) == 1, "kernel implements the default single hidden fc layer"
    # TODO(synk): generalize slab packing + an in-kernel static layer loop for len(fc_dims) > 1.
    n_h1 = fc_dims[0]
    ks = jax.random.split(key, 10)

    def unif(k, shape, f):
        return jax.random.uniform(k, shape, jnp.float32, -f, f)

    f_obs = 1.0 / math.sqrt(n_obs)
    f_1 = 1.0 / math.sqrt(obs_neurons + n_act)
    f3 = 0.003  # DDPG output-layer init

    # obs_layer
    w_obs = unif(ks[0], (n_obs, obs_neurons), f_obs)        # stored (in, out): x @ W
    b_obs = unif(ks[1], (1, obs_neurons), f_obs)
    g_obs = 1.0 + 0.1 * jax.random.normal(ks[2], (1, obs_neurons), jnp.float32)
    be_obs = 0.1 * jax.random.normal(ks[3], (1, obs_neurons), jnp.float32)

    # fc StandardLayer on concat([obs_feat, action])
    w1 = unif(ks[4], (obs_neurons + n_act, n_h1), f_1)
    b1 = unif(ks[5], (1, n_h1), f_1)
    g1 = 1.0 + 0.1 * jax.random.normal(ks[6], (1, n_h1), jnp.float32)
    be1 = 0.1 * jax.random.normal(ks[7], (1, n_h1), jnp.float32)

    # final Linear
    wq = unif(ks[8], (n_h1, n_rewards), f3)
    bq = unif(ks[9], (1, n_rewards), f3)

    # Concat fusion split MUST match torch.cat([obs_feat, action], dim=1) order:
    # obs rows first, action rows second.
    w1o, w1a = w1[:obs_neurons, :], w1[obs_neurons:, :]
    assert w1o.shape == (obs_neurons, n_h1) and w1a.shape == (n_act, n_h1)

    p_obs = jnp.concatenate([b_obs, g_obs, be_obs], axis=0)  # (3, obs_neurons)
    p1 = jnp.concatenate([b1, g1, be1], axis=0)              # (3, n_h1)

    slab, offsets = _build_param_slab([w_obs, p_obs, w1o, w1a, p1, wq, bq])

    return {
        "slab": slab, "offsets": offsets,
        "obs_neurons": obs_neurons, "n_h1": n_h1, "n_rewards": n_rewards,
        # unpacked copies for the pure-JAX reference path
        "w_obs": w_obs, "b_obs": b_obs, "g_obs": g_obs, "be_obs": be_obs,
        "w1": w1, "b1": b1, "g1": g1, "be1": be1,
        "wq": wq, "bq": bq,
    }


def ddpg_critic_reference(obs, action, p):
    """Pure-JAX reference of the same forward (explicit concat, like torch)."""
    def ln(h, g, b):
        mu = jnp.mean(h, axis=-1, keepdims=True)
        var = jnp.mean((h - mu) ** 2, axis=-1, keepdims=True)
        return (h - mu) * jax.lax.rsqrt(var + LN_EPS) * g + b

    h = jnp.maximum(ln(obs @ p["w_obs"] + p["b_obs"], p["g_obs"], p["be_obs"]), 0.0)
    x = jnp.concatenate([h, action], axis=1)
    h1 = jnp.maximum(ln(x @ p["w1"] + p["b1"], p["g1"], p["be1"]), 0.0)
    return h1 @ p["wq"] + p["bq"]


if __name__ == "__main__":
    # Small, but with enough rows per call to not be purely fixed-overhead bound
    # (review item: batch the M dimension).  Two 64-row grid blocks exercise the
    # parallel batch axis (sharded across both TCs on v7x).
    B, n_obs, n_act = 128, 24, 8
    obs_neurons, fc_dims, n_rewards = 64, [32], 1

    key = jax.random.PRNGKey(0)
    k_obs, k_act, k_par = jax.random.split(key, 3)
    obs = jax.random.normal(k_obs, (B, n_obs), jnp.float32)
    action = jax.random.normal(k_act, (B, n_act), jnp.float32)
    params = init_params(k_par, n_obs, n_act, obs_neurons, fc_dims, n_rewards)

    q = ddpg_critic_forward(obs, action, params, block_b=64)
    jax.block_until_ready(q)

    q_ref = ddpg_critic_reference(obs, action, params)
    assert q.shape == (B, n_rewards)
    assert jnp.allclose(q, q_ref, atol=1e-4, rtol=1e-4), (q, q_ref)

    print("KERNEL_OK")
</pallas_src>

<mosaic_0001>
module attributes {stable_mosaic.version = 11 : i64} {
  func.func @ddpg_critic_kernel(%arg0: i32, %arg1: memref<64x24xf32, #tpu.memory_space<vmem>>, %arg2: memref<64x8xf32, #tpu.memory_space<vmem>>, %arg3: memref<152x128xf32, #tpu.memory_space<vmem>>, %arg4: memref<64x1xf32, #tpu.memory_space<vmem>>) attributes {dimension_semantics = [#tpu.dimension_semantics<parallel>], iteration_bounds = array<i64: 2>, scalar_prefetch = 0 : i64, scratch_operands = 0 : i64, tpu.core_type = #tpu.core_type<tc>, window_params = [{transform_indices = @transform_0, window_bounds = array<i64: 64, 24>}, {transform_indices = @transform_1, window_bounds = array<i64: 64, 8>}, {pipeline_mode = #tpu.pipeline_mode<synchronous>, transform_indices = @transform_2, window_bounds = array<i64: 152, 128>}, {transform_indices = @transform_3, window_bounds = array<i64: 64, 1>}]} {
    %c0 = arith.constant 0 : index
    %c0_0 = arith.constant 0 : index
    %0 = vector.load %arg1[%c0, %c0_0] : memref<64x24xf32, #tpu.memory_space<vmem>>, vector<64x24xf32>
    %c0_1 = arith.constant 0 : index
    %c0_2 = arith.constant 0 : index
    %1 = vector.load %arg2[%c0_1, %c0_2] : memref<64x8xf32, #tpu.memory_space<vmem>>, vector<64x8xf32>
    %c0_3 = arith.constant 0 : index
    %c0_4 = arith.constant 0 : index
    %2 = vector.load %arg3[%c0_3, %c0_4] : memref<152x128xf32, #tpu.memory_space<vmem>>, vector<24x64xf32>
    %cst = arith.constant dense<0.000000e+00> : vector<64x64xf32>
    %3 = tpu.matmul %0, %2, %cst {dimension_numbers = #tpu.dot_dimension_numbers<[1], [0], [0], [1], [0, 0, 1, 1], [], []>} : vector<64x24xf32>, vector<24x64xf32>, vector<64x64xf32> -> vector<64x64xf32>
    %c24 = arith.constant 24 : index
    %c0_5 = arith.constant 0 : index
    %4 = vector.load %arg3[%c24, %c0_5] : memref<152x128xf32, #tpu.memory_space<vmem>>, vector<1x64xf32>
    %5 = vector.broadcast %4 : vector<1x64xf32> to vector<64x64xf32>
    %6 = arith.addf %3, %5 : vector<64x64xf32>
    %cst_6 = arith.constant dense<0.000000e+00> : vector<64xf32>
    %7 = vector.multi_reduction <add>, %6, %cst_6 [1] : vector<64x64xf32> to vector<64xf32>
    %8 = vector.shape_cast %7 : vector<64xf32> to vector<64x1xf32>
    %cst_7 = arith.constant 6.400000e+01 : f32
    %9 = vector.broadcast %cst_7 : f32 to vector<64x1xf32>
    %10 = arith.divf %8, %9 : vector<64x1xf32>
    %11 = vector.broadcast %10 : vector<64x1xf32> to vector<64x64xf32>
    %12 = arith.subf %6, %11 : vector<64x64xf32>
    %13 = arith.mulf %12, %12 : vector<64x64xf32>
    %cst_8 = arith.constant dense<0.000000e+00> : vector<64xf32>
    %14 = vector.multi_reduction <add>, %13, %cst_8 [1] : vector<64x64xf32> to vector<64xf32>
    %15 = vector.shape_cast %14 : vector<64xf32> to vector<64x1xf32>
    %cst_9 = arith.constant 6.400000e+01 : f32
    %16 = vector.broadcast %cst_9 : f32 to vector<64x1xf32>
    %17 = arith.divf %15, %16 : vector<64x1xf32>
    %18 = vector.broadcast %10 : vector<64x1xf32> to vector<64x64xf32>
    %19 = arith.subf %6, %18 : vector<64x64xf32>
    %cst_10 = arith.constant 9.99999974E-6 : f32
    %20 = vector.broadcast %cst_10 : f32 to vector<64x1xf32>
    %21 = arith.addf %17, %20 : vector<64x1xf32>
    %22 = math.rsqrt %21 : vector<64x1xf32>
    %23 = vector.broadcast %22 : vector<64x1xf32> to vector<64x64xf32>
    %24 = arith.mulf %19, %23 : vector<64x64xf32>
    %c25 = arith.constant 25 : index
    %c0_11 = arith.constant 0 : index
    %25 = vector.load %arg3[%c25, %c0_11] : memref<152x128xf32, #tpu.memory_space<vmem>>, vector<1x64xf32>
    %26 = vector.broadcast %25 : vector<1x64xf32> to vector<64x64xf32>
    %27 = arith.mulf %24, %26 : vector<64x64xf32>
    %c26 = arith.constant 26 : index
    %c0_12 = arith.constant 0 : index
    %28 = vector.load %arg3[%c26, %c0_12] : memref<152x128xf32, #tpu.memory_space<vmem>>, vector<1x64xf32>
    %29 = vector.broadcast %28 : vector<1x64xf32> to vector<64x64xf32>
    %30 = arith.addf %27, %29 : vector<64x64xf32>
    %cst_13 = arith.constant 0.000000e+00 : f32
    %31 = vector.broadcast %cst_13 : f32 to vector<64x64xf32>
    %32 = arith.maximumf %30, %31 : vector<64x64xf32>
    %c32 = arith.constant 32 : index
    %c0_14 = arith.constant 0 : index
    %33 = vector.load %arg3[%c32, %c0_14] : memref<152x128xf32, #tpu.memory_space<vmem>>, vector<64x32xf32>
    %cst_15 = arith.constant dense<0.000000e+00> : vector<64x32xf32>
    %34 = tpu.matmul %32, %33, %cst_15 {dimension_numbers = #tpu.dot_dimension_numbers<[1], [0], [0], [1], [0, 0, 1, 1], [], []>} : vector<64x64xf32>, vector<64x32xf32>, vector<64x32xf32> -> vector<64x32xf32>
    %c96 = arith.constant 96 : index
    %c0_16 = arith.constant 0 : index
    %35 = vector.load %arg3[%c96, %c0_16] : memref<152x128xf32, #tpu.memory_space<vmem>>, vector<8x32xf32>
    %cst_17 = arith.constant dense<0.000000e+00> : vector<64x32xf32>
    %36 = tpu.matmul %1, %35, %cst_17 {dimension_numbers = #tpu.dot_dimension_numbers<[1], [0], [0], [1], [0, 0, 1, 1], [], []>} : vector<64x8xf32>, vector<8x32xf32>, vector<64x32xf32> -> vector<64x32xf32>
    %37 = arith.addf %34, %36 : vector<64x32xf32>
    %c104 = arith.constant 104 : index
    %c0_18 = arith.constant 0 : index
    %38 = vector.load %arg3[%c104, %c0_18] : memref<152x128xf32, #tpu.memory_space<vmem>>, vector<1x32xf32>
    %39 = vector.broadcast %38 : vector<1x32xf32> to vector<64x32xf32>
    %40 = arith.addf %37, %39 : vector<64x32xf32>
    %cst_19 = arith.constant dense<0.000000e+00> : vector<64xf32>
    %41 = vector.multi_reduction <add>, %40, %cst_19 [1] : vector<64x32xf32> to vector<64xf32>
    %42 = vector.shape_cast %41 : vector<64xf32> to vector<64x1xf32>
    %cst_20 = arith.constant 3.200000e+01 : f32
    %43 = vector.broadcast %cst_20 : f32 to vector<64x1xf32>
    %44 = arith.divf %42, %43 : vector<64x1xf32>
    %45 = vector.broadcast %44 : vector<64x1xf32> to vector<64x32xf32>
    %46 = arith.subf %40, %45 : vector<64x32xf32>
    %47 = arith.mulf %46, %46 : vector<64x32xf32>
    %cst_21 = arith.constant dense<0.000000e+00> : vector<64xf32>
    %48 = vector.multi_reduction <add>, %47, %cst_21 [1] : vector<64x32xf32> to vector<64xf32>
    %49 = vector.shape_cast %48 : vector<64xf32> to vector<64x1xf32>
    %cst_22 = arith.constant 3.200000e+01 : f32
    %50 = vector.broadcast %cst_22 : f32 to vector<64x1xf32>
    %51 = arith.divf %49, %50 : vector<64x1xf32>
    %52 = vector.broadcast %44 : vector<64x1xf32> to vector<64x32xf32>
    %53 = arith.subf %40, %52 : vector<64x32xf32>
    %cst_23 = arith.constant 9.99999974E-6 : f32
    %54 = vector.broadcast %cst_23 : f32 to vector<64x1xf32>
    %55 = arith.addf %51, %54 : vector<64x1xf32>
    %56 = math.rsqrt %55 : vector<64x1xf32>
    %57 = vector.broadcast %56 : vector<64x1xf32> to vector<64x32xf32>
    %58 = arith.mulf %53, %57 : vector<64x32xf32>
    %c105 = arith.constant 105 : index
    %c0_24 = arith.constant 0 : index
    %59 = vector.load %arg3[%c105, %c0_24] : memref<152x128xf32, #tpu.memory_space<vmem>>, vector<1x32xf32>
    %60 = vector.broadcast %59 : vector<1x32xf32> to vector<64x32xf32>
    %61 = arith.mulf %58, %60 : vector<64x32xf32>
    %c106 = arith.constant 106 : index
    %c0_25 = arith.constant 0 : index
    %62 = vector.load %arg3[%c106, %c0_25] : memref<152x128xf32, #tpu.memory_space<vmem>>, vector<1x32xf32>
    %63 = vector.broadcast %62 : vector<1x32xf32> to vector<64x32xf32>
    %64 = arith.addf %61, %63 : vector<64x32xf32>
    %cst_26 = arith.constant 0.000000e+00 : f32
    %65 = vector.broadcast %cst_26 : f32 to vector<64x32xf32>
    %66 = arith.maximumf %64, %65 : vector<64x32xf32>
    %c112 = arith.constant 112 : index
    %c0_27 = arith.constant 0 : index
    %67 = vector.load %arg3[%c112, %c0_27] : memref<152x128xf32, #tpu.memory_space<vmem>>, vector<32x1xf32>
    %cst_28 = arith.constant dense<0.000000e+00> : vector<64x1xf32>
    %68 = tpu.matmul %66, %67, %cst_28 {dimension_numbers = #tpu.dot_dimension_numbers<[1], [0], [0], [1], [0, 0, 1, 1], [], []>} : vector<64x32xf32>, vector<32x1xf32>, vector<64x1xf32> -> vector<64x1xf32>
    %c144 = arith.constant 144 : index
    %c0_29 = arith.constant 0 : index
    %69 = vector.load %arg3[%c144, %c0_29] : memref<152x128xf32, #tpu.memory_space<vmem>>, vector<1x1xf32>
    %70 = vector.broadcast %69 : vector<1x1xf32> to vector<64x1xf32>
    %71 = arith.addf %68, %70 : vector<64x1xf32>
    %c0_30 = arith.constant 0 : index
    %c0_31 = arith.constant 0 : index
    %72 = vector.load %arg4[%c0_30, %c0_31] : memref<64x1xf32, #tpu.memory_space<vmem>>, vector<64x1xf32>
    tpu.vector_store %arg4[%c0_30, %c0_31], %71 {strides = array<i32>} : memref<64x1xf32, #tpu.memory_space<vmem>>, vector<64x1xf32>,
    return
  }
  func.func @transform_0(%arg0: i32) -> (i32, i32) {
    %c0_i32 = arith.constant 0 : i32
    %c0_i32_0 = arith.constant 0 : i32
    return %arg0, %c0_i32 : i32, i32
  }
  func.func @transform_1(%arg0: i32) -> (i32, i32) {
    %c0_i32 = arith.constant 0 : i32
    %c0_i32_0 = arith.constant 0 : i32
    return %arg0, %c0_i32 : i32, i32
  }
  func.func @transform_2(%arg0: i32) -> (i32, i32) {
    %c0_i32 = arith.constant 0 : i32
    %c0_i32_0 = arith.constant 0 : i32
    %c0_i32_1 = arith.constant 0 : i32
    return %c0_i32, %c0_i32_0 : i32, i32
  }
  func.func @transform_3(%arg0: i32) -> (i32, i32) {
    %c0_i32 = arith.constant 0 : i32
    %c0_i32_0 = arith.constant 0 : i32
    return %arg0, %c0_i32 : i32, i32
  }
}

</mosaic_0001>

<llo_original>
// kernel: tpu_custom_call.1
$region0: #{tpu_custom_call.1}
  #allocation0 [shape = 'u32[]', space=smem, size = 0x4, offset = 0x4, fixed_abs, tag = 'smem constant byte address 0x4 - core index']
  #allocation1 [shape = 'u32[72,128]{1,0:T(1,128)}', space=vmem, size = 0x9000, scoped, tag = 'internal scratch']
  %s0 = inlined_call_operand.vmem [shape: f32[128,24], index: 0, kind: input, shape index: {}]
  %s1 = inlined_call_operand.vmem [shape: f32[128,8], index: 1, kind: input, shape index: {}]
  %s2 = inlined_call_operand.vmem [shape: f32[152,128], index: 2, kind: input, shape index: {}]
  %s3 = inlined_call_operand.vmem [shape: f32[128,1], index: 3, kind: output, shape index: {}]
  %s4 = sld [smem:[#allocation0]]
  $region45: #{tpu_custom_call.1} parent=0
    _
  %s6 = ssub.s32 1, %s4
  %s7 = scalar_select 0, %s6, %s4
  loop: start=0, step=1, limit=4
  $region2: #{tpu_custom_call.1} parent=0 // loop_pre_header
    _
  $region3: #{tpu_custom_call.1} parent=0 // loop_header
    %s9 = sphi 0, %s13
    %p10 = scmp.ge.s32.totalorder %s9, 4
    %s19 = sphi 0, %s21
    %s22 = sphi 0, %s19
    %s23 = sphi 0, %s22
    %s39 = sphi 0, %s23
    %s45 = sphi 0, %s47
    %s48 = sphi 0, %s45
    %s49 = sphi 0, %s48
    %s65 = sphi 0, %s49
    %s69 = sphi 0, %s69
    %s71 = sphi 0, %s69
    %s72 = sphi 0, %s71
    %s86 = sphi 0, %s72
    %s92 = sphi 0, %s94
    %s95 = sphi 0, %s92
    %s96 = sphi 0, %s95
    %s112 = sphi 0, %s96
  $region4: #{tpu_custom_call.1} parent=0 // loop_header_branch
    %12 = sbr.rel (%p10) target = $region8
  $region5: #{tpu_custom_call.1} parent=0 // loop_body
    %s14 = ssub.s32 %s9, 1
    %s15 = ssub.s32 %s9, 2
    %s16 = sadd.s32 %s9, 1
    %s17 = ssub.s32 %s9, %s16
    %p18 = scmp.eq.s32.totalorder %s17, 0
    %s20 = sadd.s32 %s19, 1
    %s21 = scalar_select %p18, %s19, %s20
    %p24 = pneg %p18
    %p25 = scmp.eq.s32.totalorder %s9, 1
    %p26 = por %p24, %p25
    %p27 = scmp.ne.s32.totalorder %s19, %s22
    %p28 = scmp.eq.s32.totalorder %s9, 0
    %p29 = por %p27, %p28
    %p30 = scmp.ne.s32.totalorder %s19, %s22
    %p31 = scmp.eq.s32.totalorder %s14, 1
    %p32 = por %p30, %p31
    %p33 = scmp.ne.s32.totalorder %s22, %s23
    %p34 = scmp.eq.s32.totalorder %s14, 0
    %p35 = por %p33, %p34
    %p36 = scmp.ne.s32.totalorder %s22, %s23
    %p37 = scmp.eq.s32.totalorder %s15, 1
    %p38 = por %p36, %p37
    %p40 = scmp.ne.s32.totalorder %s23, %s39
    %p41 = scmp.eq.s32.totalorder %s15, 0
    %p42 = por %p40, %p41
    %s43 = ssub.s32 %s9, %s16
    %p44 = scmp.eq.s32.totalorder %s43, 0
    %s46 = sadd.s32 %s45, 1
    %s47 = scalar_select %p44, %s45, %s46
    %p50 = pneg %p44
    %p51 = scmp.eq.s32.totalorder %s9, 1
    %p52 = por %p50, %p51
    %p53 = scmp.ne.s32.totalorder %s45, %s48
    %p54 = scmp.eq.s32.totalorder %s9, 0
    %p55 = por %p53, %p54
    %p56 = scmp.ne.s32.totalorder %s45, %s48
    %p57 = scmp.eq.s32.totalorder %s14, 1
    %p58 = por %p56, %p57
    %p59 = scmp.ne.s32.totalorder %s48, %s49
    %p60 = scmp.eq.s32.totalorder %s14, 0
    %p61 = por %p59, %p60
    %p62 = scmp.ne.s32.totalorder %s48, %s49
    %p63 = scmp.eq.s32.totalorder %s15, 1
    %p64 = por %p62, %p63
    %p66 = scmp.ne.s32.totalorder %s49, %s65
    %p67 = scmp.eq.s32.totalorder %s15, 0
    %p68 = por %p66, %p67
    %s70 = sadd.s32 %s69, 1
    %p73 = scmp.eq.s32.totalorder %s9, 1
    %p74 = scmp.ne.s32.totalorder %s69, %s71
    %p75 = scmp.eq.s32.totalorder %s9, 0
    %p76 = por %p74, %p75
    %p77 = scmp.ne.s32.totalorder %s69, %s71
    %p78 = scmp.eq.s32.totalorder %s14, 1
    %p79 = por %p77, %p78
    %p80 = scmp.ne.s32.totalorder %s71, %s72
    %p81 = scmp.eq.s32.totalorder %s14, 0
    %p82 = por %p80, %p81
    %p83 = scmp.ne.s32.totalorder %s71, %s72
    %p84 = scmp.eq.s32.totalorder %s15, 1
    %p85 = por %p83, %p84
    %p87 = scmp.ne.s32.totalorder %s72, %s86
    %p88 = scmp.eq.s32.totalorder %s15, 0
    %p89 = por %p87, %p88
    %s90 = ssub.s32 %s9, %s16
    %p91 = scmp.eq.s32.totalorder %s90, 0
    %s93 = sadd.s32 %s92, 1
    %s94 = scalar_select %p91, %s92, %s93
    %p97 = pneg %p91
    %p98 = scmp.eq.s32.totalorder %s9, 1
    %p99 = por %p97, %p98
    %p100 = scmp.ne.s32.totalorder %s92, %s95
    %p101 = scmp.eq.s32.totalorder %s9, 0
    %p102 = por %p100, %p101
    %p103 = scmp.ne.s32.totalorder %s92, %s95
    %p104 = scmp.eq.s32.totalorder %s14, 1
    %p105 = por %p103, %p104
    %p106 = scmp.ne.s32.totalorder %s95, %s96
    %p107 = scmp.eq.s32.totalorder %s14, 0
    %p108 = por %p106, %p107
    %p109 = scmp.ne.s32.totalorder %s95, %s96
    %p110 = scmp.eq.s32.totalorder %s15, 1
    %p111 = por %p109, %p110
    %p113 = scmp.ne.s32.totalorder %s96, %s112
    %p114 = scmp.eq.s32.totalorder %s15, 0
    %p115 = por %p113, %p114
    %p116 = scmp.le.s32.totalorder 1, %s9
    %p117 = scmp.lt.s32.totalorder %s9, 3
    %p118 = pnand %p116, %p117
    %p119 = pneg %p118
    // Predicated region
    $region9: #{tpu_custom_call.1} parent=5 // pred_check
      _
    $region10: #{tpu_custom_call.1} parent=5 // pred_check_branch
      %121 = sbr.rel (%p118) target = $region12
    $region11: #{tpu_custom_call.1} parent=5 // pred_region
      %s122 = ssub.s32 %s9, 1
      // Predicated region
      $region13: #{tpu_custom_call.1} parent=11 // pred_check
        %p123 = pneg %p82
      $region14: #{tpu_custom_call.1} parent=11 // pred_check_branch
        %125 = sbr.rel (%p123) target = $region16
      $region15: #{tpu_custom_call.1} parent=11 // pred_region
        _
      $region16: #{tpu_custom_call.1} parent=11 // pred_fallthru
        _
    $region12: #{tpu_custom_call.1} parent=5 // pred_fallthru
      _
    %p126 = scmp.lt.s32.totalorder %s9, 2
    // Predicated region
    $region17: #{tpu_custom_call.1} parent=5 // pred_check
      %p127 = pneg %p126
    $region18: #{tpu_custom_call.1} parent=5 // pred_check_branch
      %129 = sbr.rel (%p127) target = $region20
    $region19: #{tpu_custom_call.1} parent=5 // pred_region
      // Predicated region
      $region21: #{tpu_custom_call.1} parent=19 // pred_check
        %p130 = pneg %p29
      $region22: #{tpu_custom_call.1} parent=19 // pred_check_branch
        %132 = sbr.rel (%p130) target = $region24
      $region23: #{tpu_custom_call.1} parent=19 // pred_region
        %s133 = smul.u32 8, %s9
        %p134 = scmp.lt.s32.totalorder %s133, 15
        %s135 = scalar_select %p134, %s133, 15
        %s136 = smul.addr %s135, 8
        %s137 = scalar_lea.vmem %s0, %s136
        %s138 = smul.u32 8, %s9
      $region24: #{tpu_custom_call.1} parent=19 // pred_fallthru
        _
      // Predicated region
      $region25: #{tpu_custom_call.1} parent=19 // pred_check
        %p139 = pneg %p55
      $region26: #{tpu_custom_call.1} parent=19 // pred_check_branch
        %141 = sbr.rel (%p139) target = $region28
      $region27: #{tpu_custom_call.1} parent=19 // pred_region
        %s142 = smul.u32 8, %s9
        %p143 = scmp.lt.s32.totalorder %s142, 15
        %s144 = scalar_select %p143, %s142, 15
        %s145 = smul.addr %s144, 8
        %s146 = scalar_lea.vmem %s1, %s145
        %s147 = smul.u32 8, %s9
      $region28: #{tpu_custom_call.1} parent=19 // pred_fallthru
        _
    $region20: #{tpu_custom_call.1} parent=5 // pred_fallthru
      _
    %p148 = scmp.le.s32.totalorder 1, %s9
    %p149 = scmp.lt.s32.totalorder %s9, 3
    %p150 = pnand %p148, %p149
    %p151 = pneg %p150
    // Predicated region
    $region29: #{tpu_custom_call.1} parent=5 // pred_check
      _
    $region30: #{tpu_custom_call.1} parent=5 // pred_check_branch
      %153 = sbr.rel (%p150) target = $region32
    $region31: #{tpu_custom_call.1} parent=5 // pred_region
      %s154 = ssub.s32 %s9, 1
      %s155 = smul.u32 8, %s14
      %p156 = scmp.lt.s32.totalorder %s155, 15
      %s157 = scalar_select %p156, %s155, 15
      %s158 = smul.addr %s157, 8
      %s159 = scalar_lea.vmem %s0, %s158
      %p160 = pneg %p35
      %p161 = pneg %p32
      %s162 = smul.u32 8, %s14
      %p163 = scmp.lt.s32.totalorder %s162, 15
      %s164 = scalar_select %p163, %s162, 15
      %s165 = smul.addr %s164, 8
      %s166 = scalar_lea.vmem %s1, %s165
      %p167 = pneg %p61
      %p168 = pneg %p58
      %p169 = pneg %p82
      %p170 = pneg %p79
      %p171 = pneg %p108
      %p172 = pneg %p105
      %s173 = smul.u32 8, %s14
      %p174 = scmp.lt.s32.totalorder %s173, 15
      %s175 = scalar_select %p174, %s173, 15
      %s176 = smul.addr %s175, 8
      %s177 = scalar_lea.vmem %s3, %s176
      %s178 = smul.u32 8, %s14
      %p179 = scmp.lt.s32.totalorder %s178, 15
      %s180 = scalar_select %p179, %s178, 15
      %s181 = smul.addr %s180, 8
      %s182 = scalar_lea.vmem %s0, %s181
      %s183 = smul.u32 8, %s14
      %s184 = smul.u32 8, %s14
      %p185 = scmp.lt.s32.totalorder %s184, 15
      %s186 = scalar_select %p185, %s184, 15
      %s187 = smul.addr %s186, 8
      %s188 = scalar_lea.vmem %s1, %s187
      %s189 = smul.u32 8, %s14
      %s190 = smul.u32 8, %s14
      %p191 = scmp.lt.s32.totalorder %s190, 15
      %s192 = scalar_select %p191, %s190, 15
      %s193 = smul.addr %s192, 8
      %s194 = scalar_lea.vmem %s3, %s193
      %s195 = smul.u32 8, %s14
      %v196 = vld [vmem:[%s182] sm:$0xff]
      %v197 = vld [vmem:[%s182 + $0x8] sm:$0xff]
      %v198 = vld [vmem:[%s182 + $0x10] sm:$0xff]
      %v199 = vld [vmem:[%s182 + $0x18] sm:$0xff]
      %v200 = vld [vmem:[%s182 + $0x20] sm:$0xff]
      %v201 = vld [vmem:[%s182 + $0x28] sm:$0xff]
      %v202 = vld [vmem:[%s182 + $0x30] sm:$0xff]
      %v203 = vld [vmem:[%s182 + $0x38] sm:$0xff]
      %v204 = vld [vmem:[%s188] sm:$0xff]
      %v205 = vld [vmem:[%s188 + $0x8] sm:$0xff]
      %v206 = vld [vmem:[%s188 + $0x10] sm:$0xff]
      %v207 = vld [vmem:[%s188 + $0x18] sm:$0xff]
      %v208 = vld [vmem:[%s188 + $0x20] sm:$0xff]
      %v209 = vld [vmem:[%s188 + $0x28] sm:$0xff]
      %v210 = vld [vmem:[%s188 + $0x30] sm:$0xff]
      %v211 = vld [vmem:[%s188 + $0x38] sm:$0xff]
      %v212 = vld [vmem:[%s2] sm:$0xff]
      %v213 = vld [vmem:[%s2 + $0x8] sm:$0xff]
      %v214 = vld [vmem:[%s2 + $0x10] sm:$0xff]
      %v215 = vld [vmem:[%s2 + $0x18] sm:$0x1]
      %v216 = vperm.slane %v215, 0
      %vm217 = vcmask 195584
      %v219 = vsel %vm217, %v196, 0
      %v222 = vsel %vm217, %v197, 0
      %v225 = vsel %vm217, %v198, 0
      %v228 = vsel %vm217, %v199, 0
      %v231 = vsel %vm217, %v200, 0
      %v234 = vsel %vm217, %v201, 0
      %v237 = vsel %vm217, %v202, 0
      %v240 = vsel %vm217, %v203, 0
      %242 = vmatpush.msra.mxu0 0.0
      %243 = vmatpush.msra.mxu0 0.0
      %244 = vmatpush.msra.mxu0 0.0
      %245 = vmatpush.msra.mxu0 0.0
      %246 = vmatpush.msra.mxu0 0.0
      %247 = vmatpush.msra.mxu0 0.0
      %248 = vmatpush.msra.mxu0 0.0
      %249 = vmatpush.msra.mxu0 0.0
      %250 = vmatpush.msra.mxu0 0.0
      %251 = vmatpush.msra.mxu0 0.0
      %252 = vmatpush.msra.mxu0 0.0
      %253 = vmatpush.msra.mxu0 0.0
      %254 = vmatpush.msra.mxu0 0.0
      %255 = vmatpush.msra.mxu0 %v214
      %256 = vmatpush.msra.mxu0 %v213
      %257 = vmatpush.msra.mxu0 %v212
      %258 = vmatmul.f32.gmra.mxu0 %v219
      %v259 = vpop.f32.mrf.mxu0
      %v260 = vadd.f32 %v216, %v259
      %261 = vmatmul.f32.gmra.mxu0 %v222
      %v262 = vpop.f32.mrf.mxu0
      %v263 = vadd.f32 %v216, %v262
      %264 = vmatmul.f32.gmra.mxu0 %v225
      %v265 = vpop.f32.mrf.mxu0
      %v266 = vadd.f32 %v216, %v265
      %267 = vmatmul.f32.gmra.mxu0 %v228
      %v268 = vpop.f32.mrf.mxu0
      %v269 = vadd.f32 %v216, %v268
      %270 = vmatmul.f32.gmra.mxu0 %v231
      %v271 = vpop.f32.mrf.mxu0
      %v272 = vadd.f32 %v216, %v271
      %273 = vmatmul.f32.gmra.mxu0 %v234
      %v274 = vpop.f32.mrf.mxu0
      %v275 = vadd.f32 %v216, %v274
      %276 = vmatmul.f32.gmra.mxu0 %v237
      %v277 = vpop.f32.mrf.mxu0
      %v278 = vadd.f32 %v216, %v277
      %279 = vmatmul.f32.gmra.mxu0 %v240
      %v280 = vpop.f32.mrf.mxu0
      %v281 = vadd.f32 %v216, %v280
      %282 = vdwg.mxu0
      %vm283 = vcmask 523264
      %v284 = vsel %vm283, %v260, 0.0
      %285 = vadd.xlane.f32.xlu0 %v284
      %v286 = vpop.xlane.xlu0 %285
      %v287 = vsel %vm283, %v263, 0.0
      %288 = vadd.xlane.f32.xlu0 %v287
      %v289 = vpop.xlane.xlu0 %288
      %v290 = vsel %vm283, %v266, 0.0
      %291 = vadd.xlane.f32.xlu0 %v290
      %v292 = vpop.xlane.xlu0 %291
      %v293 = vsel %vm283, %v269, 0.0
      %294 = vadd.xlane.f32.xlu0 %v293
      %v295 = vpop.xlane.xlu0 %294
      %v296 = vsel %vm283, %v272, 0.0
      %297 = vadd.xlane.f32.xlu0 %v296
      %v298 = vpop.xlane.xlu0 %297
      %v299 = vsel %vm283, %v275, 0.0
      %300 = vadd.xlane.f32.xlu0 %v299
      %v301 = vpop.xlane.xlu0 %300
      %v302 = vsel %vm283, %v278, 0.0
      %303 = vadd.xlane.f32.xlu0 %v302
      %v304 = vpop.xlane.xlu0 %303
      %v305 = vsel %vm283, %v281, 0.0
      %306 = vadd.xlane.f32.xlu0 %v305
      %v307 = vpop.xlane.xlu0 %306
      %v308 = vrcp.pop 64.0
      %v309 = vmul.f32 64.0, %v308
      %v310 = vsub.f32 1.0, %v309
      %v311 = vmul.f32 %v308, %v310
      %v312 = vadd.f32 %v308, %v311
      %vm313 = vweird.f32 %v308
      %v314 = vsel %vm313, %v308, %v312
      %v315 = vmul.f32 %v286, %v314
      %v316 = vmul.f32 %v289, %v314
      %v317 = vmul.f32 %v292, %v314
      %v318 = vmul.f32 %v295, %v314
      %v319 = vmul.f32 %v298, %v314
      %v320 = vmul.f32 %v301, %v314
      %v321 = vmul.f32 %v304, %v314
      %v322 = vmul.f32 %v307, %v314
      %v323 = vsub.f32 %v260, %v315
      %v324 = vsub.f32 %v263, %v316
      %v325 = vsub.f32 %v266, %v317
      %v326 = vsub.f32 %v269, %v318
      %v327 = vsub.f32 %v272, %v319
      %v328 = vsub.f32 %v275, %v320
      %v329 = vsub.f32 %v278, %v321
      %v330 = vsub.f32 %v281, %v322
      %v331 = vmul.f32 %v323, %v323
      %v332 = vmul.f32 %v324, %v324
      %v333 = vmul.f32 %v325, %v325
      %v334 = vmul.f32 %v326, %v326
      %v335 = vmul.f32 %v327, %v327
      %v336 = vmul.f32 %v328, %v328
      %v337 = vmul.f32 %v329, %v329
      %v338 = vmul.f32 %v330, %v330
      %v339 = vsel %vm283, %v331, 0.0
      %340 = vadd.xlane.f32.xlu0 %v339
      %v341 = vpop.xlane.xlu0 %340
      %v342 = vsel %vm283, %v332, 0.0
      %343 = vadd.xlane.f32.xlu0 %v342
      %v344 = vpop.xlane.xlu0 %343
      %v345 = vsel %vm283, %v333, 0.0
      %346 = vadd.xlane.f32.xlu0 %v345
      %v347 = vpop.xlane.xlu0 %346
      %v348 = vsel %vm283, %v334, 0.0
      %349 = vadd.xlane.f32.xlu0 %v348
      %v350 = vpop.xlane.xlu0 %349
      %v351 = vsel %vm283, %v335, 0.0
      %352 = vadd.xlane.f32.xlu0 %v351
      %v353 = vpop.xlane.xlu0 %352
      %v354 = vsel %vm283, %v336, 0.0
      %355 = vadd.xlane.f32.xlu0 %v354
      %v356 = vpop.xlane.xlu0 %355
      %v357 = vsel %vm283, %v337, 0.0
      %358 = vadd.xlane.f32.xlu0 %v357
      %v359 = vpop.xlane.xlu0 %358
      %v360 = vsel %vm283, %v338, 0.0
      %361 = vadd.xlane.f32.xlu0 %v360
      %v362 = vpop.xlane.xlu0 %361
      %v363 = vmul.f32 %v341, %v314
      %v364 = vmul.f32 %v344, %v314
      %v365 = vmul.f32 %v347, %v314
      %v366 = vmul.f32 %v350, %v314
      %v367 = vmul.f32 %v353, %v314
      %v368 = vmul.f32 %v356, %v314
      %v369 = vmul.f32 %v359, %v314
      %v370 = vmul.f32 %v362, %v314
      %v371 = vadd.f32 %v363, 1e-05
      %v372 = vadd.f32 %v364, 1e-05
      %v373 = vadd.f32 %v365, 1e-05
      %v374 = vadd.f32 %v366, 1e-05
      %v375 = vadd.f32 %v367, 1e-05
      %v376 = vadd.f32 %v368, 1e-05
      %v377 = vadd.f32 %v369, 1e-05
      %v378 = vadd.f32 %v370, 1e-05
      %v379 = vrsqrt.pop %v371
      %v380 = vmul.f32 %v379, %v371
      %v381 = vmul.f32 %v380, %v379
      %v382 = vmul.f32 0.5, %v381
      %v383 = vsub.f32 1.5, %v382
      %v384 = vmul.f32 %v379, %v383
      %vm385 = vweird.f32 %v371
      %vm386 = vweird.f32 %v379
      %vm387 = vmor %vm385, %vm386
      %v388 = vsel %vm387, %v379, %v384
      %v389 = vrsqrt.pop %v372
      %v390 = vmul.f32 %v389, %v372
      %v391 = vmul.f32 %v390, %v389
      %v392 = vmul.f32 0.5, %v391
      %v393 = vsub.f32 1.5, %v392
      %v394 = vmul.f32 %v389, %v393
      %vm395 = vweird.f32 %v372
      %vm396 = vweird.f32 %v389
      %vm397 = vmor %vm395, %vm396
      %v398 = vsel %vm397, %v389, %v394
      %v399 = vrsqrt.pop %v373
      %v400 = vmul.f32 %v399, %v373
      %v401 = vmul.f32 %v400, %v399
      %v402 = vmul.f32 0.5, %v401
      %v403 = vsub.f32 1.5, %v402
      %v404 = vmul.f32 %v399, %v403
      %vm405 = vweird.f32 %v373
      %vm406 = vweird.f32 %v399
      %vm407 = vmor %vm405, %vm406
      %v408 = vsel %vm407, %v399, %v404
      %v409 = vrsqrt.pop %v374
      %v410 = vmul.f32 %v409, %v374
      %v411 = vmul.f32 %v410, %v409
      %v412 = vmul.f32 0.5, %v411
      %v413 = vsub.f32 1.5, %v412
      %v414 = vmul.f32 %v409, %v413
      %vm415 = vweird.f32 %v374
      %vm416 = vweird.f32 %v409
      %vm417 = vmor %vm415, %vm416
      %v418 = vsel %vm417, %v409, %v414
      %v419 = vrsqrt.pop %v375
      %v420 = vmul.f32 %v419, %v375
      %v421 = vmul.f32 %v420, %v419
      %v422 = vmul.f32 0.5, %v421
      %v423 = vsub.f32 1.5, %v422
      %v424 = vmul.f32 %v419, %v423
      %vm425 = vweird.f32 %v375
      %vm426 = vweird.f32 %v419
      %vm427 = vmor %vm425, %vm426
      %v428 = vsel %vm427, %v419, %v424
      %v429 = vrsqrt.pop %v376
      %v430 = vmul.f32 %v429, %v376
      %v431 = vmul.f32 %v430, %v429
      %v432 = vmul.f32 0.5, %v431
      %v433 = vsub.f32 1.5, %v432
      %v434 = vmul.f32 %v429, %v433
      %vm435 = vweird.f32 %v376
      %vm436 = vweird.f32 %v429
      %vm437 = vmor %vm435, %vm436
      %v438 = vsel %vm437, %v429, %v434
      %v439 = vrsqrt.pop %v377
      %v440 = vmul.f32 %v439, %v377
      %v441 = vmul.f32 %v440, %v439
      %v442 = vmul.f32 0.5, %v441
      %v443 = vsub.f32 1.5, %v442
      %v444 = vmul.f32 %v439, %v443
      %vm445 = vweird.f32 %v377
      %vm446 = vweird.f32 %v439
      %vm447 = vmor %vm445, %vm446
      %v448 = vsel %vm447, %v439, %v444
      %v449 = vrsqrt.pop %v378
      %v450 = vmul.f32 %v449, %v378
      %v451 = vmul.f32 %v450, %v449
      %v452 = vmul.f32 0.5, %v451
      %v453 = vsub.f32 1.5, %v452
      %v454 = vmul.f32 %v449, %v453
      %vm455 = vweird.f32 %v378
      %vm456 = vweird.f32 %v449
      %vm457 = vmor %vm455, %vm456
      %v458 = vsel %vm457, %v449, %v454
      %v459 = vmul.f32 %v323, %v388
      %v460 = vmul.f32 %v324, %v398
      %v461 = vmul.f32 %v325, %v408
      %v462 = vmul.f32 %v326, %v418
      %v463 = vmul.f32 %v327, %v428
      %v464 = vmul.f32 %v328, %v438
      %v465 = vmul.f32 %v329, %v448
      %v466 = vmul.f32 %v330, %v458
      %v467 = vld [vmem:[%s2 + $0x19] sm:$0x1]
      %v468 = vperm.slane %v467, 0
      %v469 = vmul.f32 %v459, %v468
      %v470 = vmul.f32 %v460, %v468
      %v471 = vmul.f32 %v461, %v468
      %v472 = vmul.f32 %v462, %v468
      %v473 = vmul.f32 %v463, %v468
      %v474 = vmul.f32 %v464, %v468
      %v475 = vmul.f32 %v465, %v468
      %v476 = vmul.f32 %v466, %v468
      %v477 = vld [vmem:[%s2 + $0x1a] sm:$0x1]
      %v478 = vperm.slane %v477, 0
      %v479 = vadd.f32 %v469, %v478
      %v480 = vadd.f32 %v470, %v478
      %v481 = vadd.f32 %v471, %v478
      %v482 = vadd.f32 %v472, %v478
      %v483 = vadd.f32 %v473, %v478
      %v484 = vadd.f32 %v474, %v478
      %v485 = vadd.f32 %v475, %v478
      %v486 = vadd.f32 %v476, %v478
      %v487 = vmax.f32 %v479, 0.0
      %v488 = vmax.f32 %v480, 0.0
      %v489 = vmax.f32 %v481, 0.0
      %v490 = vmax.f32 %v482, 0.0
      %v491 = vmax.f32 %v483, 0.0
      %v492 = vmax.f32 %v484, 0.0
      %v493 = vmax.f32 %v485, 0.0
      %v494 = vmax.f32 %v486, 0.0
      %v495 = vld [vmem:[%s2 + $0x20] sm:$0xff]
      %v496 = vld [vmem:[%s2 + $0x28] sm:$0xff]
      %v497 = vld [vmem:[%s2 + $0x30] sm:$0xff]
      %v498 = vld [vmem:[%s2 + $0x38] sm:$0xff]
      %v499 = vld [vmem:[%s2 + $0x40] sm:$0xff]
      %v500 = vld [vmem:[%s2 + $0x48] sm:$0xff]
      %v501 = vld [vmem:[%s2 + $0x50] sm:$0xff]
      %v502 = vld [vmem:[%s2 + $0x58] sm:$0xff]
      %v503 = vld [vmem:[%s2 + $0x60] sm:$0xff]
      %vm504 = vcmask 64512
      %v506 = vsel %vm504, %v204, 0
      %v509 = vsel %vm504, %v205, 0
      %v512 = vsel %vm504, %v206, 0
      %v515 = vsel %vm504, %v207, 0
      %v518 = vsel %vm504, %v208, 0
      %v521 = vsel %vm504, %v209, 0
      %v524 = vsel %vm504, %v210, 0
      %v527 = vsel %vm504, %v211, 0
      %529 = vmatpush.msra.mxu0 0.0
      %530 = vmatpush.msra.mxu0 0.0
      %531 = vmatpush.msra.mxu0 0.0
      %532 = vmatpush.msra.mxu0 0.0
      %533 = vmatpush.msra.mxu0 0.0
      %534 = vmatpush.msra.mxu0 0.0
      %535 = vmatpush.msra.mxu0 0.0
      %536 = vmatpush.msra.mxu0 0.0
      %537 = vmatpush.msra.mxu0 0.0
      %538 = vmatpush.msra.mxu0 0.0
      %539 = vmatpush.msra.mxu0 0.0
      %540 = vmatpush.msra.mxu0 0.0
      %541 = vmatpush.msra.mxu0 0.0
      %542 = vmatpush.msra.mxu0 0.0
      %543 = vmatpush.msra.mxu0 0.0
      %544 = vmatpush.msra.mxu0 %v503
      %545 = vmatmul.f32.gmra.mxu0 %v506
      %v546 = vpop.f32.mrf.mxu0
      %v547 = vadd.f32 0.0, %v546
      %548 = vmatmul.f32.gmra.mxu0 %v509
      %v549 = vpop.f32.mrf.mxu0
      %v550 = vadd.f32 0.0, %v549
      %551 = vmatmul.f32.gmra.mxu0 %v512
      %v552 = vpop.f32.mrf.mxu0
      %v553 = vadd.f32 0.0, %v552
      %554 = vmatmul.f32.gmra.mxu0 %v515
      %v555 = vpop.f32.mrf.mxu0
      %v556 = vadd.f32 0.0, %v555
      %557 = vmatmul.f32.gmra.mxu0 %v518
      %v558 = vpop.f32.mrf.mxu0
      %v559 = vadd.f32 0.0, %v558
      %560 = vmatmul.f32.gmra.mxu0 %v521
      %v561 = vpop.f32.mrf.mxu0
      %v562 = vadd.f32 0.0, %v561
      %563 = vmatmul.f32.gmra.mxu0 %v524
      %v564 = vpop.f32.mrf.mxu0
      %v565 = vadd.f32 0.0, %v564
      %566 = vmatmul.f32.gmra.mxu0 %v527
      %v567 = vpop.f32.mrf.mxu0
      %v568 = vadd.f32 0.0, %v567
      %569 = vdwg.mxu0
      %v571 = vsel %vm283, %v487, 0
      %v574 = vsel %vm283, %v488, 0
      %v577 = vsel %vm283, %v489, 0
      %v580 = vsel %vm283, %v490, 0
      %v583 = vsel %vm283, %v491, 0
      %v586 = vsel %vm283, %v492, 0
      %v589 = vsel %vm283, %v493, 0
      %v592 = vsel %vm283, %v494, 0
      %594 = vmatpush.msra.mxu0 0.0
      %595 = vmatpush.msra.mxu0 0.0
      %596 = vmatpush.msra.mxu0 0.0
      %597 = vmatpush.msra.mxu0 0.0
      %598 = vmatpush.msra.mxu0 0.0
      %599 = vmatpush.msra.mxu0 0.0
      %600 = vmatpush.msra.mxu0 0.0
      %601 = vmatpush.msra.mxu0 0.0
      %602 = vmatpush.msra.mxu0 %v502
      %603 = vmatpush.msra.mxu0 %v501
      %604 = vmatpush.msra.mxu0 %v500
      %605 = vmatpush.msra.mxu0 %v499
      %606 = vmatpush.msra.mxu0 %v498
      %607 = vmatpush.msra.mxu0 %v497
      %608 = vmatpush.msra.mxu0 %v496
      %609 = vmatpush.msra.mxu0 %v495
      %610 = vmatmul.f32.gmra.mxu0 %v571
      %v611 = vpop.f32.mrf.mxu0
      %v612 = vadd.f32 %v547, %v611
      %613 = vmatmul.f32.gmra.mxu0 %v574
      %v614 = vpop.f32.mrf.mxu0
      %v615 = vadd.f32 %v550, %v614
      %616 = vmatmul.f32.gmra.mxu0 %v577
      %v617 = vpop.f32.mrf.mxu0
      %v618 = vadd.f32 %v553, %v617
      %619 = vmatmul.f32.gmra.mxu0 %v580
      %v620 = vpop.f32.mrf.mxu0
      %v621 = vadd.f32 %v556, %v620
      %622 = vmatmul.f32.gmra.mxu0 %v583
      %v623 = vpop.f32.mrf.mxu0
      %v624 = vadd.f32 %v559, %v623
      %625 = vmatmul.f32.gmra.mxu0 %v586
      %v626 = vpop.f32.mrf.mxu0
      %v627 = vadd.f32 %v562, %v626
      %628 = vmatmul.f32.gmra.mxu0 %v589
      %v629 = vpop.f32.mrf.mxu0
      %v630 = vadd.f32 %v565, %v629
      %631 = vmatmul.f32.gmra.mxu0 %v592
      %v632 = vpop.f32.mrf.mxu0
      %v633 = vadd.f32 %v568, %v632
      %634 = vdwg.mxu0
      %v635 = vld [vmem:[%s2 + $0x68] sm:$0x1]
      %v636 = vperm.slane %v635, 0
      %v637 = vadd.f32 %v612, %v636
      %v638 = vadd.f32 %v615, %v636
      %v639 = vadd.f32 %v618, %v636
      %v640 = vadd.f32 %v621, %v636
      %v641 = vadd.f32 %v624, %v636
      %v642 = vadd.f32 %v627, %v636
      %v643 = vadd.f32 %v630, %v636
      %v644 = vadd.f32 %v633, %v636
      %vm645 = vcmask 261120
      %v646 = vsel %vm645, %v637, 0.0
      %647 = vadd.xlane.f32.xlu0 %v646
      %v648 = vpop.xlane.xlu0 %647
      %v649 = vsel %vm645, %v638, 0.0
      %650 = vadd.xlane.f32.xlu0 %v649
      %v651 = vpop.xlane.xlu0 %650
      %v652 = vsel %vm645, %v639, 0.0
      %653 = vadd.xlane.f32.xlu0 %v652
      %v654 = vpop.xlane.xlu0 %653
      %v655 = vsel %vm645, %v640, 0.0
      %656 = vadd.xlane.f32.xlu0 %v655
      %v657 = vpop.xlane.xlu0 %656
      %v658 = vsel %vm645, %v641, 0.0
      %659 = vadd.xlane.f32.xlu0 %v658
      %v660 = vpop.xlane.xlu0 %659
      %v661 = vsel %vm645, %v642, 0.0
      %662 = vadd.xlane.f32.xlu0 %v661
      %v663 = vpop.xlane.xlu0 %662
      %v664 = vsel %vm645, %v643, 0.0
      %665 = vadd.xlane.f32.xlu0 %v664
      %v666 = vpop.xlane.xlu0 %665
      %v667 = vsel %vm645, %v644, 0.0
      %668 = vadd.xlane.f32.xlu0 %v667
      %v669 = vpop.xlane.xlu0 %668
      %v670 = vrcp.pop 32.0
      %v671 = vmul.f32 32.0, %v670
      %v672 = vsub.f32 1.0, %v671
      %v673 = vmul.f32 %v670, %v672
      %v674 = vadd.f32 %v670, %v673
      %vm675 = vweird.f32 %v670
      %v676 = vsel %vm675, %v670, %v674
      %v677 = vmul.f32 %v648, %v676
      %v678 = vmul.f32 %v651, %v676
      %v679 = vmul.f32 %v654, %v676
      %v680 = vmul.f32 %v657, %v676
      %v681 = vmul.f32 %v660, %v676
      %v682 = vmul.f32 %v663, %v676
      %v683 = vmul.f32 %v666, %v676
      %v684 = vmul.f32 %v669, %v676
      %v685 = vsub.f32 %v637, %v677
      %v686 = vsub.f32 %v638, %v678
      %v687 = vsub.f32 %v639, %v679
      %v688 = vsub.f32 %v640, %v680
      %v689 = vsub.f32 %v641, %v681
      %v690 = vsub.f32 %v642, %v682
      %v691 = vsub.f32 %v643, %v683
      %v692 = vsub.f32 %v644, %v684
      %v693 = vmul.f32 %v685, %v685
      %v694 = vmul.f32 %v686, %v686
      %v695 = vmul.f32 %v687, %v687
      %v696 = vmul.f32 %v688, %v688
      %v697 = vmul.f32 %v689, %v689
      %v698 = vmul.f32 %v690, %v690
      %v699 = vmul.f32 %v691, %v691
      %v700 = vmul.f32 %v692, %v692
      %v701 = vsel %vm645, %v693, 0.0
      %702 = vadd.xlane.f32.xlu0 %v701
      %v703 = vpop.xlane.xlu0 %702
      %v704 = vsel %vm645, %v694, 0.0
      %705 = vadd.xlane.f32.xlu0 %v704
      %v706 = vpop.xlane.xlu0 %705
      %v707 = vsel %vm645, %v695, 0.0
      %708 = vadd.xlane.f32.xlu0 %v707
      %v709 = vpop.xlane.xlu0 %708
      %v710 = vsel %vm645, %v696, 0.0
      %711 = vadd.xlane.f32.xlu0 %v710
      %v712 = vpop.xlane.xlu0 %711
      %v713 = vsel %vm645, %v697, 0.0
      %714 = vadd.xlane.f32.xlu0 %v713
      %v715 = vpop.xlane.xlu0 %714
      %v716 = vsel %vm645, %v698, 0.0
      %717 = vadd.xlane.f32.xlu0 %v716
      %v718 = vpop.xlane.xlu0 %717
      %v719 = vsel %vm645, %v699, 0.0
      %720 = vadd.xlane.f32.xlu0 %v719
      %v721 = vpop.xlane.xlu0 %720
      %v722 = vsel %vm645, %v700, 0.0
      %723 = vadd.xlane.f32.xlu0 %v722
      %v724 = vpop.xlane.xlu0 %723
      %v725 = vmul.f32 %v703, %v676
      %v726 = vmul.f32 %v706, %v676
      %v727 = vmul.f32 %v709, %v676
      %v728 = vmul.f32 %v712, %v676
      %v729 = vmul.f32 %v715, %v676
      %v730 = vmul.f32 %v718, %v676
      %v731 = vmul.f32 %v721, %v676
      %v732 = vmul.f32 %v724, %v676
      %v733 = vadd.f32 %v725, 1e-05
      %v734 = vadd.f32 %v726, 1e-05
      %v735 = vadd.f32 %v727, 1e-05
      %v736 = vadd.f32 %v728, 1e-05
      %v737 = vadd.f32 %v729, 1e-05
      %v738 = vadd.f32 %v730, 1e-05
      %v739 = vadd.f32 %v731, 1e-05
      %v740 = vadd.f32 %v732, 1e-05
      %v741 = vrsqrt.pop %v733
      %v742 = vmul.f32 %v741, %v733
      %v743 = vmul.f32 %v742, %v741
      %v744 = vmul.f32 0.5, %v743
      %v745 = vsub.f32 1.5, %v744
      %v746 = vmul.f32 %v741, %v745
      %vm747 = vweird.f32 %v733
      %vm748 = vweird.f32 %v741
      %vm749 = vmor %vm747, %vm748
      %v750 = vsel %vm749, %v741, %v746
      %v751 = vrsqrt.pop %v734
      %v752 = vmul.f32 %v751, %v734
      %v753 = vmul.f32 %v752, %v751
      %v754 = vmul.f32 0.5, %v753
      %v755 = vsub.f32 1.5, %v754
      %v756 = vmul.f32 %v751, %v755
      %vm757 = vweird.f32 %v734
      %vm758 = vweird.f32 %v751
      %vm759 = vmor %vm757, %vm758
      %v760 = vsel %vm759, %v751, %v756
      %v761 = vrsqrt.pop %v735
      %v762 = vmul.f32 %v761, %v735
      %v763 = vmul.f32 %v762, %v761
      %v764 = vmul.f32 0.5, %v763
      %v765 = vsub.f32 1.5, %v764
      %v766 = vmul.f32 %v761, %v765
      %vm767 = vweird.f32 %v735
      %vm768 = vweird.f32 %v761
      %vm769 = vmor %vm767, %vm768
      %v770 = vsel %vm769, %v761, %v766
      %v771 = vrsqrt.pop %v736
      %v772 = vmul.f32 %v771, %v736
      %v773 = vmul.f32 %v772, %v771
      %v774 = vmul.f32 0.5, %v773
      %v775 = vsub.f32 1.5, %v774
      %v776 = vmul.f32 %v771, %v775
      %vm777 = vweird.f32 %v736
      %vm778 = vweird.f32 %v771
      %vm779 = vmor %vm777, %vm778
      %v780 = vsel %vm779, %v771, %v776
      %v781 = vrsqrt.pop %v737
      %v782 = vmul.f32 %v781, %v737
      %v783 = vmul.f32 %v782, %v781
      %v784 = vmul.f32 0.5, %v783
      %v785 = vsub.f32 1.5, %v784
      %v786 = vmul.f32 %v781, %v785
      %vm787 = vweird.f32 %v737
      %vm788 = vweird.f32 %v781
      %vm789 = vmor %vm787, %vm788
      %v790 = vsel %vm789, %v781, %v786
      %v791 = vrsqrt.pop %v738
      %v792 = vmul.f32 %v791, %v738
      %v793 = vmul.f32 %v792, %v791
      %v794 = vmul.f32 0.5, %v793
      %v795 = vsub.f32 1.5, %v794
      %v796 = vmul.f32 %v791, %v795
      %vm797 = vweird.f32 %v738
      %vm798 = vweird.f32 %v791
      %vm799 = vmor %vm797, %vm798
      %v800 = vsel %vm799, %v791, %v796
      %v801 = vrsqrt.pop %v739
      %v802 = vmul.f32 %v801, %v739
      %v803 = vmul.f32 %v802, %v801
      %v804 = vmul.f32 0.5, %v803
      %v805 = vsub.f32 1.5, %v804
      %v806 = vmul.f32 %v801, %v805
      %vm807 = vweird.f32 %v739
      %vm808 = vweird.f32 %v801
      %vm809 = vmor %vm807, %vm808
      %v810 = vsel %vm809, %v801, %v806
      %v811 = vrsqrt.pop %v740
      %v812 = vmul.f32 %v811, %v740
      %v813 = vmul.f32 %v812, %v811
      %v814 = vmul.f32 0.5, %v813
      %v815 = vsub.f32 1.5, %v814
      %v816 = vmul.f32 %v811, %v815
      %vm817 = vweird.f32 %v740
      %vm818 = vweird.f32 %v811
      %vm819 = vmor %vm817, %vm818
      %v820 = vsel %vm819, %v811, %v816
      %v821 = vmul.f32 %v685, %v750
      %v822 = vmul.f32 %v686, %v760
      %v823 = vmul.f32 %v687, %v770
      %v824 = vmul.f32 %v688, %v780
      %v825 = vmul.f32 %v689, %v790
      %v826 = vmul.f32 %v690, %v800
      %v827 = vmul.f32 %v691, %v810
      %v828 = vmul.f32 %v692, %v820
      %v829 = vld [vmem:[%s2 + $0x69] sm:$0x1]
      %v830 = vperm.slane %v829, 0
      %v831 = vmul.f32 %v821, %v830
      %v832 = vmul.f32 %v822, %v830
      %v833 = vmul.f32 %v823, %v830
      %v834 = vmul.f32 %v824, %v830
      %v835 = vmul.f32 %v825, %v830
      %v836 = vmul.f32 %v826, %v830
      %v837 = vmul.f32 %v827, %v830
      %v838 = vmul.f32 %v828, %v830
      %v839 = vld [vmem:[%s2 + $0x6a] sm:$0x1]
      %v840 = vperm.slane %v839, 0
      %v841 = vadd.f32 %v831, %v840
      %v842 = vadd.f32 %v832, %v840
      %v843 = vadd.f32 %v833, %v840
      %v844 = vadd.f32 %v834, %v840
      %v845 = vadd.f32 %v835, %v840
      %v846 = vadd.f32 %v836, %v840
      %v847 = vadd.f32 %v837, %v840
      %v848 = vadd.f32 %v838, %v840
      %v849 = vmax.f32 %v841, 0.0
      %v850 = vmax.f32 %v842, 0.0
      %v851 = vmax.f32 %v843, 0.0
      %v852 = vmax.f32 %v844, 0.0
      %v853 = vmax.f32 %v845, 0.0
      %v854 = vmax.f32 %v846, 0.0
      %v855 = vmax.f32 %v847, 0.0
      %v856 = vmax.f32 %v848, 0.0
      %v857 = vld [vmem:[%s2 + $0x70] sm:$0xff]
      %v858 = vld [vmem:[%s2 + $0x78] sm:$0xff]
      %v859 = vld [vmem:[%s2 + $0x80] sm:$0xff]
      %v860 = vld [vmem:[%s2 + $0x88] sm:$0xff]
      %v861 = vld [vmem:[%s2 + $0x90] sm:$0x1]
      %v862 = vperm.slane %v861, 0
      %v864 = vsel %vm645, %v849, 0
      %v867 = vsel %vm645, %v850, 0
      %v870 = vsel %vm645, %v851, 0
      %v873 = vsel %vm645, %v852, 0
      %v876 = vsel %vm645, %v853, 0
      %v879 = vsel %vm645, %v854, 0
      %v882 = vsel %vm645, %v855, 0
      %v885 = vsel %vm645, %v856, 0
      %887 = vmatpush.msra.mxu0 0.0
      %888 = vmatpush.msra.mxu0 0.0
      %889 = vmatpush.msra.mxu0 0.0
      %890 = vmatpush.msra.mxu0 0.0
      %891 = vmatpush.msra.mxu0 0.0
      %892 = vmatpush.msra.mxu0 0.0
      %893 = vmatpush.msra.mxu0 0.0
      %894 = vmatpush.msra.mxu0 0.0
      %895 = vmatpush.msra.mxu0 0.0
      %896 = vmatpush.msra.mxu0 0.0
      %897 = vmatpush.msra.mxu0 0.0
      %898 = vmatpush.msra.mxu0 0.0
      %899 = vmatpush.msra.mxu0 %v860
      %900 = vmatpush.msra.mxu0 %v859
      %901 = vmatpush.msra.mxu0 %v858
      %902 = vmatpush.msra.mxu0 %v857
      %903 = vmatmul.f32.gmra.mxu0 %v864
      %v904 = vpop.f32.mrf.mxu0
      %v905 = vadd.f32 %v862, %v904
      %906 = vmatmul.f32.gmra.mxu0 %v867
      %v907 = vpop.f32.mrf.mxu0
      %v908 = vadd.f32 %v862, %v907
      %909 = vmatmul.f32.gmra.mxu0 %v870
      %v910 = vpop.f32.mrf.mxu0
      %v911 = vadd.f32 %v862, %v910
      %912 = vmatmul.f32.gmra.mxu0 %v873
      %v913 = vpop.f32.mrf.mxu0
      %v914 = vadd.f32 %v862, %v913
      %915 = vmatmul.f32.gmra.mxu0 %v876
      %v916 = vpop.f32.mrf.mxu0
      %v917 = vadd.f32 %v862, %v916
      %918 = vmatmul.f32.gmra.mxu0 %v879
      %v919 = vpop.f32.mrf.mxu0
      %v920 = vadd.f32 %v862, %v919
      %921 = vmatmul.f32.gmra.mxu0 %v882
      %v922 = vpop.f32.mrf.mxu0
      %v923 = vadd.f32 %v862, %v922
      %924 = vmatmul.f32.gmra.mxu0 %v885
      %v925 = vpop.f32.mrf.mxu0
      %v926 = vadd.f32 %v862, %v925
      %927 = vdwg.mxu0
      %vm928 = vcmask 7168
      %929 = vst.msk [vmem:[%s194] sm:$0xff] %vm928, %v905
      %930 = vst.msk [vmem:[%s194 + $0x8] sm:$0xff] %vm928, %v908
      %931 = vst.msk [vmem:[%s194 + $0x10] sm:$0xff] %vm928, %v911
      %932 = vst.msk [vmem:[%s194 + $0x18] sm:$0xff] %vm928, %v914
      %933 = vst.msk [vmem:[%s194 + $0x20] sm:$0xff] %vm928, %v917
      %934 = vst.msk [vmem:[%s194 + $0x28] sm:$0xff] %vm928, %v920
      %935 = vst.msk [vmem:[%s194 + $0x30] sm:$0xff] %vm928, %v923
      %936 = vst.msk [vmem:[%s194 + $0x38] sm:$0xff] %vm928, %v926
      %s937 = smul.u32 8, %s14
      %p938 = scmp.lt.s32.totalorder %s937, 15
      %s939 = scalar_select %p938, %s937, 15
      %s940 = smul.addr %s939, 8
      %s941 = scalar_lea.vmem %s3, %s940
      // Predicated region
      $region33: #{tpu_custom_call.1} parent=31 // pred_check
        %p942 = pneg %p105
      $region34: #{tpu_custom_call.1} parent=31 // pred_check_branch
        %944 = sbr.rel (%p942) target = $region36
      $region35: #{tpu_custom_call.1} parent=31 // pred_region
        %s945 = smul.u32 8, %s14
      $region36: #{tpu_custom_call.1} parent=31 // pred_fallthru
        _
    $region32: #{tpu_custom_call.1} parent=5 // pred_fallthru
      _
    %p946 = scmp.le.s32.totalorder 2, %s9
    // Predicated region
    $region37: #{tpu_custom_call.1} parent=5 // pred_check
      %p947 = pneg %p946
    $region38: #{tpu_custom_call.1} parent=5 // pred_check_branch
      %949 = sbr.rel (%p947) target = $region40
    $region39: #{tpu_custom_call.1} parent=5 // pred_region
      %s950 = ssub.s32 %s9, 2
      // Predicated region
      $region41: #{tpu_custom_call.1} parent=39 // pred_check
        %p951 = pneg %p111
      $region42: #{tpu_custom_call.1} parent=39 // pred_check_branch
        %953 = sbr.rel (%p951) target = $region44
      $region43: #{tpu_custom_call.1} parent=39 // pred_region
        %s954 = smul.u32 8, %s15
        %p955 = scmp.lt.s32.totalorder %s954, 15
        %s956 = scalar_select %p955, %s954, 15
        %s957 = smul.addr %s956, 8
        %s958 = scalar_lea.vmem %s3, %s957
      $region44: #{tpu_custom_call.1} parent=39 // pred_fallthru
        _
    $region40: #{tpu_custom_call.1} parent=5 // pred_fallthru
      _
  $region6: #{tpu_custom_call.1} parent=0 // loop_footer
    %s13 = sadd.s32 1, %s9
  $region7: #{tpu_custom_call.1} parent=0 // loop_footer_branch
    %8 = sbr.rel target = $region3
  $region8: #{tpu_custom_call.1} parent=0 // loop_exit
    _

</llo_original>
